<compile_context>
chip_gen: v5e
topology: v5e:2x2
jax: 0.10.0
libtpu: 0.0.40
codegen_flags: <defaults>
</compile_context>

<pallas_src>
import math
import numpy as np
import jax
import jax.numpy as jnp
from jax import lax
from jax.experimental import pallas as pl
from jax.experimental.pallas import tpu as pltpu

_SUBLANES = 8
_INV_SQRT_2PI = 1.0 / math.sqrt(2.0 * math.pi)


def _uarelu_kernel(mean_ref, var_ref, ymean_ref, yvar_ref):
    # Upcast to f32 for the transcendental math / cancellation-sensitive terms.
    xm = mean_ref[...].astype(jnp.float32)
    xv = var_ref[...].astype(jnp.float32)
    eps = 1e-12

    # Keep the reference eps placement: x_mean / (sqrt(2*var) + eps).
    r = xm / (jnp.sqrt(2.0 * xv) + eps)
    expo = jnp.exp(-(r * r))           # EUP
    erf = lax.erf(r)                   # EUP
    one_plus_erf = 1.0 + erf

    # Shared sqrt:  sqrt((var+eps)/(2*pi)) == s / sqrt(2*pi)
    s = jnp.sqrt(xv + eps)
    t = _INV_SQRT_2PI * s * expo       # reused in both y_mean and y_var

    y_mean = t + 0.5 * xm * one_plus_erf
    y_var = (0.5 * (xv + xm * xm) * one_plus_erf
             - xm * t
             - y_mean * y_mean)

    ymean_ref[...] = y_mean.astype(ymean_ref.dtype)
    yvar_ref[...] = y_var.astype(yvar_ref.dtype)


def _choose_layout(n_elems):
    """Pick a lane width W (multiple of 128). Prefer a W such that n_elems is
    an exact multiple of 8*W -> no padding / no extra HBM copies at all."""
    for w in (4096, 2048, 1024, 512, 256, 128):
        if n_elems % (_SUBLANES * w) == 0:
            return w, n_elems // w, False
    # Fallback: pad only up to a multiple of (8, W).
    w = 1024 if n_elems >= _SUBLANES * 1024 else 128
    rows = pl.cdiv(n_elems, w)
    rows = pl.cdiv(rows, _SUBLANES) * _SUBLANES
    return w, rows, True


def uarelu(x_mean, x_var, *, target_block_bytes=1 << 20):
    """Elementwise UAReLU moment propagation. Inputs: NCHW (or any shape)."""
    assert x_mean.shape == x_var.shape
    orig_shape = x_mean.shape
    dtype = x_mean.dtype
    n_elems = int(np.prod(orig_shape))

    lane_w, rows, needs_pad = _choose_layout(n_elems)

    flat_mean = x_mean.reshape(-1)
    flat_var = x_var.reshape(-1)
    if needs_pad:
        # Pad with 1.0 (safe for sqrt / divide); padding is discarded after.
        pad = rows * lane_w - n_elems
        flat_mean = jnp.concatenate([flat_mean, jnp.ones((pad,), dtype)])
        flat_var = jnp.concatenate([flat_var, jnp.ones((pad,), dtype)])

    mean2d = flat_mean.reshape(rows, lane_w)
    var2d = flat_var.reshape(rows, lane_w)

    # ~1 MiB per array per block (multiple of 8 rows), clamped to the slab.
    itemsize = jnp.dtype(dtype).itemsize
    block_rows = max(_SUBLANES,
                     (target_block_bytes // (lane_w * itemsize))
                     // _SUBLANES * _SUBLANES)
    block_rows = min(block_rows, rows)

    grid = (pl.cdiv(rows, block_rows),)
    spec = pl.BlockSpec((block_rows, lane_w), lambda i: (i, 0))

    y_mean2d, y_var2d = pl.pallas_call(
        _uarelu_kernel,
        out_shape=(
            jax.ShapeDtypeStruct((rows, lane_w), dtype),
            jax.ShapeDtypeStruct((rows, lane_w), dtype),
        ),
        grid_spec=pltpu.PrefetchScalarGridSpec(
            num_scalar_prefetch=0,
            grid=grid,
            in_specs=[spec, spec],
            out_specs=[spec, spec],
        ),
        compiler_params=pltpu.CompilerParams(
            dimension_semantics=("parallel",)),
    )(mean2d, var2d)

    if needs_pad:
        y_mean = y_mean2d.reshape(-1)[:n_elems].reshape(orig_shape)
        y_var = y_var2d.reshape(-1)[:n_elems].reshape(orig_shape)
    else:
        y_mean = y_mean2d.reshape(orig_shape)
        y_var = y_var2d.reshape(orig_shape)
    return [y_mean, y_var]


def _uarelu_ref(x_mean, x_var):
    """Pure-JAX reference mirroring the PyTorch forward exactly."""
    eps = 1e-12
    r = x_mean / (jnp.sqrt(2.0 * x_var) + eps)
    expo = jnp.exp(-r ** 2)
    erf = lax.erf(r)
    y_mean = jnp.sqrt((x_var + eps) / (2.0 * math.pi)) * expo + 0.5 * x_mean * (1.0 + erf)
    y_var = (0.5 * (x_var + x_mean ** 2) * (1.0 + erf)
             - 1.0 / np.sqrt(2.0 * math.pi) * x_mean * jnp.sqrt(x_var + eps) * expo
             - y_mean ** 2)
    return [y_mean, y_var]


if __name__ == "__main__":
    key = jax.random.PRNGKey(0)
    k_mean, k_var = jax.random.split(key)

    # NCHW inputs, as the surrounding uncertainty-aware conv stack would give.
    shape = (2, 4, 16, 16)
    x_mean = jax.random.normal(k_mean, shape, dtype=jnp.float32)
    # Variances must be positive.
    x_var = jnp.abs(jax.random.normal(k_var, shape, dtype=jnp.float32)) + 0.1

    y_mean, y_var = uarelu(x_mean, x_var)
    jax.block_until_ready(y_mean)
    jax.block_until_ready(y_var)

    ref_mean, ref_var = _uarelu_ref(x_mean, x_var)
    np.testing.assert_allclose(np.asarray(y_mean), np.asarray(ref_mean),
                               rtol=1e-5, atol=1e-5)
    np.testing.assert_allclose(np.asarray(y_var), np.asarray(ref_var),
                               rtol=1e-5, atol=1e-5)

    # Also exercise the padding fallback path with an odd-sized shape.
    shape2 = (2, 4, 15, 15)
    x_mean2 = jax.random.normal(k_mean, shape2, dtype=jnp.float32)
    x_var2 = jnp.abs(jax.random.normal(k_var, shape2, dtype=jnp.float32)) + 0.1
    y_mean2, y_var2 = uarelu(x_mean2, x_var2)
    jax.block_until_ready(y_mean2)
    ref_mean2, ref_var2 = _uarelu_ref(x_mean2, x_var2)
    np.testing.assert_allclose(np.asarray(y_mean2), np.asarray(ref_mean2),
                               rtol=1e-5, atol=1e-5)
    np.testing.assert_allclose(np.asarray(y_var2), np.asarray(ref_var2),
                               rtol=1e-5, atol=1e-5)

    print("KERNEL_OK")
</pallas_src>

<mosaic_0001>
module attributes {stable_mosaic.version = 11 : i64} {
  func.func @_uarelu_kernel(%arg0: i32, %arg1: memref<8x256xf32, #tpu.memory_space<vmem>>, %arg2: memref<8x256xf32, #tpu.memory_space<vmem>>, %arg3: memref<8x256xf32, #tpu.memory_space<vmem>>, %arg4: memref<8x256xf32, #tpu.memory_space<vmem>>) attributes {dimension_semantics = [#tpu.dimension_semantics<parallel>], iteration_bounds = array<i64: 1>, scalar_prefetch = 0 : i64, scratch_operands = 0 : i64, tpu.core_type = #tpu.core_type<tc>, window_params = [{transform_indices = @transform_0, window_bounds = array<i64: 8, 256>}, {transform_indices = @transform_1, window_bounds = array<i64: 8, 256>}, {transform_indices = @transform_2, window_bounds = array<i64: 8, 256>}, {transform_indices = @transform_3, window_bounds = array<i64: 8, 256>}]} {
    %c0 = arith.constant 0 : index
    %c0_0 = arith.constant 0 : index
    %0 = vector.load %arg1[%c0, %c0_0] : memref<8x256xf32, #tpu.memory_space<vmem>>, vector<8x256xf32>
    %c0_1 = arith.constant 0 : index
    %c0_2 = arith.constant 0 : index
    %1 = vector.load %arg2[%c0_1, %c0_2] : memref<8x256xf32, #tpu.memory_space<vmem>>, vector<8x256xf32>
    %cst = arith.constant 2.000000e+00 : f32
    %2 = vector.broadcast %cst : f32 to vector<8x256xf32>
    %3 = arith.mulf %2, %1 : vector<8x256xf32>
    %4 = math.sqrt %3 : vector<8x256xf32>
    %cst_3 = arith.constant 9.99999996E-13 : f32
    %5 = vector.broadcast %cst_3 : f32 to vector<8x256xf32>
    %6 = arith.addf %4, %5 : vector<8x256xf32>
    %7 = arith.divf %0, %6 : vector<8x256xf32>
    %8 = arith.mulf %7, %7 : vector<8x256xf32>
    %cst_4 = arith.constant 0.000000e+00 : f32
    %9 = vector.broadcast %cst_4 : f32 to vector<8x256xf32>
    %10 = arith.subf %9, %8 : vector<8x256xf32>
    %11 = math.exp %10 : vector<8x256xf32>
    %12 = math.erf %7 : vector<8x256xf32>
    %cst_5 = arith.constant 1.000000e+00 : f32
    %13 = vector.broadcast %cst_5 : f32 to vector<8x256xf32>
    %14 = arith.addf %13, %12 : vector<8x256xf32>
    %cst_6 = arith.constant 9.99999996E-13 : f32
    %15 = vector.broadcast %cst_6 : f32 to vector<8x256xf32>
    %16 = arith.addf %1, %15 : vector<8x256xf32>
    %17 = math.sqrt %16 : vector<8x256xf32>
    %cst_7 = arith.constant 0.398942292 : f32
    %18 = vector.broadcast %cst_7 : f32 to vector<8x256xf32>
    %19 = arith.mulf %18, %17 : vector<8x256xf32>
    %20 = arith.mulf %19, %11 : vector<8x256xf32>
    %cst_8 = arith.constant 5.000000e-01 : f32
    %21 = vector.broadcast %cst_8 : f32 to vector<8x256xf32>
    %22 = arith.mulf %21, %0 : vector<8x256xf32>
    %23 = arith.mulf %22, %14 : vector<8x256xf32>
    %24 = arith.addf %20, %23 : vector<8x256xf32>
    %25 = arith.mulf %0, %0 : vector<8x256xf32>
    %26 = arith.addf %1, %25 : vector<8x256xf32>
    %cst_9 = arith.constant 5.000000e-01 : f32
    %27 = vector.broadcast %cst_9 : f32 to vector<8x256xf32>
    %28 = arith.mulf %27, %26 : vector<8x256xf32>
    %29 = arith.mulf %28, %14 : vector<8x256xf32>
    %30 = arith.mulf %0, %20 : vector<8x256xf32>
    %31 = arith.subf %29, %30 : vector<8x256xf32>
    %32 = arith.mulf %24, %24 : vector<8x256xf32>
    %33 = arith.subf %31, %32 : vector<8x256xf32>
    %c0_10 = arith.constant 0 : index
    %c0_11 = arith.constant 0 : index
    %34 = vector.load %arg3[%c0_10, %c0_11] : memref<8x256xf32, #tpu.memory_space<vmem>>, vector<8x256xf32>
    tpu.vector_store %arg3[%c0_10, %c0_11], %24 {strides = array<i32>} : memref<8x256xf32, #tpu.memory_space<vmem>>, vector<8x256xf32>,
    %c0_12 = arith.constant 0 : index
    %c0_13 = arith.constant 0 : index
    %35 = vector.load %arg4[%c0_12, %c0_13] : memref<8x256xf32, #tpu.memory_space<vmem>>, vector<8x256xf32>
    tpu.vector_store %arg4[%c0_12, %c0_13], %33 {strides = array<i32>} : memref<8x256xf32, #tpu.memory_space<vmem>>, vector<8x256xf32>,
    return
  }
  func.func @transform_0(%arg0: i32) -> (i32, i32) {
    %c0_i32 = arith.constant 0 : i32
    %c0_i32_0 = arith.constant 0 : i32
    return %arg0, %c0_i32 : i32, i32
  }
  func.func @transform_1(%arg0: i32) -> (i32, i32) {
    %c0_i32 = arith.constant 0 : i32
    %c0_i32_0 = arith.constant 0 : i32
    return %arg0, %c0_i32 : i32, i32
  }
  func.func @transform_2(%arg0: i32) -> (i32, i32) {
    %c0_i32 = arith.constant 0 : i32
    %c0_i32_0 = arith.constant 0 : i32
    return %arg0, %c0_i32 : i32, i32
  }
  func.func @transform_3(%arg0: i32) -> (i32, i32) {
    %c0_i32 = arith.constant 0 : i32
    %c0_i32_0 = arith.constant 0 : i32
    return %arg0, %c0_i32 : i32, i32
  }
}

</mosaic_0001>

<llo_original>
// kernel: tpu_custom_call.1
$region0: #{tpu_custom_call.1}
  #allocation0 [shape = 'u32[]', space=smem, size = 0x4, offset = 0x4, fixed_abs, tag = 'smem constant byte address 0x4 - core index']
  #allocation1 [shape = 'u32[72,128]{1,0:T(1,128)}', space=vmem, size = 0x9000, scoped, tag = 'internal scratch']
  %s0 = inlined_call_operand.hbm [shape: f32[8,256], index: 0, kind: input, shape index: {}]
  %s1 = inlined_call_operand.hbm [shape: f32[8,256], index: 1, kind: input, shape index: {}]
  %s2 = inlined_call_operand.hbm [shape: f32[8,256], index: 2, kind: output, shape index: {0}]
  %s3 = inlined_call_operand.hbm [shape: f32[8,256], index: 3, kind: output, shape index: {1}]
  %4 = xla_tuple %s2, %s3
  %s5 = sld [smem:[#allocation0]]
  $region34: #{tpu_custom_call.1} parent=0
    _
  %s7 = ssub.s32 1, %s5
  %s8 = scalar_select 0, %s7, %s5
  $region1: #{tpu_custom_call.1} parent=0
    #allocation2 [shape = 'u8[8192]{0}', space=vmem, size = 0x2000, scoped, tag = 'input window, operand 0, single buffered']
    #allocation3 [shape = 's32[1]{0}', space=sflag, size = 0x4, scoped, tag = 'scoped memory for tpu_custom_call.1']
    #allocation4 [shape = 's32[1]{0}', space=sflag, size = 0x4, scoped, tag = 'scoped memory for tpu_custom_call.1']
    #allocation5 [shape = 'u8[8192]{0}', space=vmem, size = 0x2000, scoped, tag = 'input window, operand 1, single buffered']
    #allocation6 [shape = 's32[1]{0}', space=sflag, size = 0x4, scoped, tag = 'scoped memory for tpu_custom_call.1']
    #allocation7 [shape = 'u8[8192]{0}', space=vmem, size = 0x2000, scoped, tag = 'output window, operand 0, single buffered']
    #allocation8 [shape = 'u8[8192]{0}', space=vmem, size = 0x2000, scoped, tag = 'output window, operand 1, single buffered']
    #allocation9 [shape = 's32[1]{0}', space=sflag, size = 0x4, scoped, tag = 'scoped memory for tpu_custom_call.1']
    %9 = vsyncpa [#allocation3], 0
    %10 = vsyncpa [#allocation6], 0
    %11 = vsyncpa [#allocation4], 0
    %12 = vsyncpa [#allocation9], 0
    // Predicated region
    $region2: #{tpu_custom_call.1} parent=1 // pred_check
      _
    $region3: #{tpu_custom_call.1} parent=1 // pred_check_branch
      %14 = sbr.rel (0) target = $region5
    $region4: #{tpu_custom_call.1} parent=1 // pred_region
      %16 = vsyncadd [#allocation3], 0
      %s18 = sshll.u32 %s0, 4
      %s19 = int_to_ptr.hbm [resolvable:$true] %s18
      %s20 = sshll.u32 [#allocation2], 4
      %s21 = int_to_ptr.vmem [resolvable:$true] %s20
      %23 = dma.hbm_to_vmem [thread:$0]  %s19, 256, %s21, [#allocation3]
    $region5: #{tpu_custom_call.1} parent=1 // pred_fallthru
      _
    // Predicated region
    $region6: #{tpu_custom_call.1} parent=1 // pred_check
      _
    $region7: #{tpu_custom_call.1} parent=1 // pred_check_branch
      %25 = sbr.rel (0) target = $region9
    $region8: #{tpu_custom_call.1} parent=1 // pred_region
      %27 = vsyncadd [#allocation6], 0
      %s29 = sshll.u32 %s1, 4
      %s30 = int_to_ptr.hbm [resolvable:$true] %s29
      %s31 = sshll.u32 [#allocation5], 4
      %s32 = int_to_ptr.vmem [resolvable:$true] %s31
      %34 = dma.hbm_to_vmem [thread:$0]  %s30, 256, %s32, [#allocation6]
    $region9: #{tpu_custom_call.1} parent=1 // pred_fallthru
      _
    // Predicated region
    $region10: #{tpu_custom_call.1} parent=1 // pred_check
      _
    $region11: #{tpu_custom_call.1} parent=1 // pred_check_branch
      %36 = sbr.rel (0) target = $region13
    $region12: #{tpu_custom_call.1} parent=1 // pred_region
      %38 = dma.done [#allocation3], 256
    $region13: #{tpu_custom_call.1} parent=1 // pred_fallthru
      _
    // Predicated region
    $region14: #{tpu_custom_call.1} parent=1 // pred_check
      _
    $region15: #{tpu_custom_call.1} parent=1 // pred_check_branch
      %40 = sbr.rel (0) target = $region17
    $region16: #{tpu_custom_call.1} parent=1 // pred_region
      %42 = dma.done [#allocation6], 256
    $region17: #{tpu_custom_call.1} parent=1 // pred_fallthru
      _
    %v43 = vld [vmem:[#allocation2] sm:$0xff]
    %v44 = vld [vmem:[#allocation2 + $0x8] sm:$0xff]
    %v45 = vld [vmem:[#allocation5] sm:$0xff]
    %v46 = vld [vmem:[#allocation5 + $0x8] sm:$0xff]
    %v47 = vmul.f32 %v45, 2.0
    %v48 = vmul.f32 %v46, 2.0
    %v49 = vrsqrt.pop %v47
    %v50 = vmul.f32 %v49, %v47
    %v51 = vmul.f32 %v50, %v49
    %v52 = vmul.f32 0.5, %v51
    %v53 = vsub.f32 1.5, %v52
    %v54 = vmul.f32 %v49, %v53
    %v55 = vmul.f32 %v47, %v54
    %vm56 = vcmp.eq.f32.partialorder %v47, inf
    %v57 = vsel %vm56, %v47, %v55
    %vm58 = vcmp.eq.f32.partialorder %v47, 0.0
    %v59 = vand.u32 %v47, 2147483648
    %v60 = vsel %vm58, %v59, %v57
    %v61 = vrsqrt.pop %v48
    %v62 = vmul.f32 %v61, %v48
    %v63 = vmul.f32 %v62, %v61
    %v64 = vmul.f32 0.5, %v63
    %v65 = vsub.f32 1.5, %v64
    %v66 = vmul.f32 %v61, %v65
    %v67 = vmul.f32 %v48, %v66
    %vm68 = vcmp.eq.f32.partialorder %v48, inf
    %v69 = vsel %vm68, %v48, %v67
    %vm70 = vcmp.eq.f32.partialorder %v48, 0.0
    %v71 = vand.u32 %v48, 2147483648
    %v72 = vsel %vm70, %v71, %v69
    %v73 = vadd.f32 %v60, 1e-12
    %v74 = vadd.f32 %v72, 1e-12
    %v75 = vrcp.pop %v73
    %v76 = vmul.f32 %v73, %v75
    %v77 = vsub.f32 1.0, %v76
    %v78 = vmul.f32 %v75, %v77
    %v79 = vadd.f32 %v75, %v78
    %vm80 = vweird.f32 %v73
    %vm81 = vweird.f32 %v75
    %vm82 = vmor %vm80, %vm81
    %v83 = vsel %vm82, %v75, %v79
    %v84 = vand.u32 2147483647, %v73
    %vm85 = vcmp.eq.f32.partialorder %v84, 8.507059e+37
    %v86 = vand.u32 %v73, 2147483648
    %v87 = vor.u32 1.1754944e-38, %v86
    %v88 = vsel %vm85, %v87, %v83
    %v89 = vmul.f32 %v43, %v88
    %v90 = vrcp.pop %v74
    %v91 = vmul.f32 %v74, %v90
    %v92 = vsub.f32 1.0, %v91
    %v93 = vmul.f32 %v90, %v92
    %v94 = vadd.f32 %v90, %v93
    %vm95 = vweird.f32 %v74
    %vm96 = vweird.f32 %v90
    %vm97 = vmor %vm95, %vm96
    %v98 = vsel %vm97, %v90, %v94
    %v99 = vand.u32 2147483647, %v74
    %vm100 = vcmp.eq.f32.partialorder %v99, 8.507059e+37
    %v101 = vand.u32 %v74, 2147483648
    %v102 = vor.u32 1.1754944e-38, %v101
    %v103 = vsel %vm100, %v102, %v98
    %v104 = vmul.f32 %v44, %v103
    %v105 = vmul.f32 %v89, %v89
    %v106 = vmul.f32 %v104, %v104
    %v107 = vsub.f32 0.0, %v105
    %v108 = vsub.f32 0.0, %v106
    %v109 = vmul.f32 %v107, 1.442695
    %v110 = vpow.pop %v109
    %v111 = vmul.f32 %v108, 1.442695
    %v112 = vpow.pop %v111
    %v113 = vmul.f32 %v89, %v89
    %v114 = vmin.f32 16.0, %v113
    %v115 = vmul.f32 %v114, 2.1237322e-06
    %v116 = vadd.f32 %v115, 0.00028619796
    %v117 = vmul.f32 %v114, %v116
    %v118 = vadd.f32 %v117, 0.0036580483
    %v119 = vmul.f32 %v114, %v118
    %v120 = vadd.f32 %v119, 0.05243302
    %v121 = vmul.f32 %v114, %v120
    %v122 = vadd.f32 %v121, 0.18741608
    %v123 = vmul.f32 %v114, %v122
    %v124 = vadd.f32 %v123, 1.1283791
    %v125 = vmul.f32 %v89, %v124
    %v126 = vmul.f32 %v114, 3.8918573e-05
    %v127 = vadd.f32 %v126, 0.001143296
    %v128 = vmul.f32 %v114, %v127
    %v129 = vadd.f32 %v128, 0.014752088
    %v130 = vmul.f32 %v114, %v129
    %v131 = vadd.f32 %v130, 0.112945676
    %v132 = vmul.f32 %v114, %v131
    %v133 = vadd.f32 %v132, 0.4994258
    %v134 = vmul.f32 %v114, %v133
    %v135 = vadd.f32 %v134, 1.0
    %v136 = vrcp.pop %v135
    %v137 = vmul.f32 %v135, %v136
    %v138 = vsub.f32 1.0, %v137
    %v139 = vmul.f32 %v136, %v138
    %v140 = vadd.f32 %v136, %v139
    %vm141 = vweird.f32 %v135
    %vm142 = vweird.f32 %v136
    %vm143 = vmor %vm141, %vm142
    %v144 = vsel %vm143, %v136, %v140
    %v145 = vand.u32 2147483647, %v135
    %vm146 = vcmp.eq.f32.partialorder %v145, 8.507059e+37
    %v147 = vand.u32 %v135, 2147483648
    %v148 = vor.u32 1.1754944e-38, %v147
    %v149 = vsel %vm146, %v148, %v144
    %v150 = vmul.f32 %v125, %v149
    %v151 = vmin.f32 %v150, 1.0
    %v152 = vmax.f32 %v151, -1.0
    %v153 = vmul.f32 %v104, %v104
    %v154 = vmin.f32 16.0, %v153
    %v155 = vmul.f32 %v154, 2.1237322e-06
    %v156 = vadd.f32 %v155, 0.00028619796
    %v157 = vmul.f32 %v154, %v156
    %v158 = vadd.f32 %v157, 0.0036580483
    %v159 = vmul.f32 %v154, %v158
    %v160 = vadd.f32 %v159, 0.05243302
    %v161 = vmul.f32 %v154, %v160
    %v162 = vadd.f32 %v161, 0.18741608
    %v163 = vmul.f32 %v154, %v162
    %v164 = vadd.f32 %v163, 1.1283791
    %v165 = vmul.f32 %v104, %v164
    %v166 = vmul.f32 %v154, 3.8918573e-05
    %v167 = vadd.f32 %v166, 0.001143296
    %v168 = vmul.f32 %v154, %v167
    %v169 = vadd.f32 %v168, 0.014752088
    %v170 = vmul.f32 %v154, %v169
    %v171 = vadd.f32 %v170, 0.112945676
    %v172 = vmul.f32 %v154, %v171
    %v173 = vadd.f32 %v172, 0.4994258
    %v174 = vmul.f32 %v154, %v173
    %v175 = vadd.f32 %v174, 1.0
    %v176 = vrcp.pop %v175
    %v177 = vmul.f32 %v175, %v176
    %v178 = vsub.f32 1.0, %v177
    %v179 = vmul.f32 %v176, %v178
    %v180 = vadd.f32 %v176, %v179
    %vm181 = vweird.f32 %v175
    %vm182 = vweird.f32 %v176
    %vm183 = vmor %vm181, %vm182
    %v184 = vsel %vm183, %v176, %v180
    %v185 = vand.u32 2147483647, %v175
    %vm186 = vcmp.eq.f32.partialorder %v185, 8.507059e+37
    %v187 = vand.u32 %v175, 2147483648
    %v188 = vor.u32 1.1754944e-38, %v187
    %v189 = vsel %vm186, %v188, %v184
    %v190 = vmul.f32 %v165, %v189
    %v191 = vmin.f32 %v190, 1.0
    %v192 = vmax.f32 %v191, -1.0
    %v193 = vadd.f32 %v152, 1.0
    %v194 = vadd.f32 %v192, 1.0
    %v195 = vadd.f32 %v45, 1e-12
    %v196 = vadd.f32 %v46, 1e-12
    %v197 = vrsqrt.pop %v195
    %v198 = vmul.f32 %v197, %v195
    %v199 = vmul.f32 %v198, %v197
    %v200 = vmul.f32 0.5, %v199
    %v201 = vsub.f32 1.5, %v200
    %v202 = vmul.f32 %v197, %v201
    %v203 = vmul.f32 %v195, %v202
    %vm204 = vcmp.eq.f32.partialorder %v195, inf
    %v205 = vsel %vm204, %v195, %v203
    %vm206 = vcmp.eq.f32.partialorder %v195, 0.0
    %v207 = vand.u32 %v195, 2147483648
    %v208 = vsel %vm206, %v207, %v205
    %v209 = vrsqrt.pop %v196
    %v210 = vmul.f32 %v209, %v196
    %v211 = vmul.f32 %v210, %v209
    %v212 = vmul.f32 0.5, %v211
    %v213 = vsub.f32 1.5, %v212
    %v214 = vmul.f32 %v209, %v213
    %v215 = vmul.f32 %v196, %v214
    %vm216 = vcmp.eq.f32.partialorder %v196, inf
    %v217 = vsel %vm216, %v196, %v215
    %vm218 = vcmp.eq.f32.partialorder %v196, 0.0
    %v219 = vand.u32 %v196, 2147483648
    %v220 = vsel %vm218, %v219, %v217
    %v221 = vmul.f32 %v208, 0.3989423
    %v222 = vmul.f32 %v220, 0.3989423
    %v223 = vmul.f32 %v221, %v110
    %v224 = vmul.f32 %v222, %v112
    %v225 = vmul.f32 %v43, 0.5
    %v226 = vmul.f32 %v44, 0.5
    %v227 = vmul.f32 %v225, %v193
    %v228 = vmul.f32 %v226, %v194
    %v229 = vadd.f32 %v223, %v227
    %v230 = vadd.f32 %v224, %v228
    %v231 = vmul.f32 %v43, %v43
    %v232 = vmul.f32 %v44, %v44
    %v233 = vadd.f32 %v45, %v231
    %v234 = vadd.f32 %v46, %v232
    %v235 = vmul.f32 %v233, 0.5
    %v236 = vmul.f32 %v234, 0.5
    %v237 = vmul.f32 %v235, %v193
    %v238 = vmul.f32 %v236, %v194
    %v239 = vmul.f32 %v43, %v223
    %v240 = vmul.f32 %v44, %v224
    %v241 = vsub.f32 %v237, %v239
    %v242 = vsub.f32 %v238, %v240
    %v243 = vmul.f32 %v229, %v229
    %v244 = vmul.f32 %v230, %v230
    %v245 = vsub.f32 %v241, %v243
    %v246 = vsub.f32 %v242, %v244
    %247 = vst [vmem:[#allocation7] sm:$0xff] %v229
    %248 = vst [vmem:[#allocation7 + $0x8] sm:$0xff] %v230
    %249 = vst [vmem:[#allocation8] sm:$0xff] %v245
    %250 = vst [vmem:[#allocation8 + $0x8] sm:$0xff] %v246
    // Predicated region
    $region18: #{tpu_custom_call.1} parent=1 // pred_check
      _
    $region19: #{tpu_custom_call.1} parent=1 // pred_check_branch
      %252 = sbr.rel (0) target = $region21
    $region20: #{tpu_custom_call.1} parent=1 // pred_region
      %254 = vsyncadd [#allocation4], 0
      %s256 = sshll.u32 [#allocation7], 4
      %s257 = int_to_ptr.vmem [resolvable:$true] %s256
      %s258 = sshll.u32 %s2, 4
      %s259 = int_to_ptr.hbm [resolvable:$true] %s258
      %261 = dma.vmem_to_hbm [thread:$0]  %s257, 256, %s259, [#allocation4]
    $region21: #{tpu_custom_call.1} parent=1 // pred_fallthru
      _
    // Predicated region
    $region22: #{tpu_custom_call.1} parent=1 // pred_check
      _
    $region23: #{tpu_custom_call.1} parent=1 // pred_check_branch
      %263 = sbr.rel (0) target = $region25
    $region24: #{tpu_custom_call.1} parent=1 // pred_region
      %265 = vsyncadd [#allocation9], 0
      %s267 = sshll.u32 [#allocation8], 4
      %s268 = int_to_ptr.vmem [resolvable:$true] %s267
      %s269 = sshll.u32 %s3, 4
      %s270 = int_to_ptr.hbm [resolvable:$true] %s269
      %272 = dma.vmem_to_hbm [thread:$0]  %s268, 256, %s270, [#allocation9]
    $region25: #{tpu_custom_call.1} parent=1 // pred_fallthru
      _
    // Predicated region
    $region26: #{tpu_custom_call.1} parent=1 // pred_check
      _
    $region27: #{tpu_custom_call.1} parent=1 // pred_check_branch
      %274 = sbr.rel (0) target = $region29
    $region28: #{tpu_custom_call.1} parent=1 // pred_region
      %276 = dma.done [#allocation4], 256
    $region29: #{tpu_custom_call.1} parent=1 // pred_fallthru
      _
    // Predicated region
    $region30: #{tpu_custom_call.1} parent=1 // pred_check
      _
    $region31: #{tpu_custom_call.1} parent=1 // pred_check_branch
      %278 = sbr.rel (0) target = $region33
    $region32: #{tpu_custom_call.1} parent=1 // pred_region
      %280 = dma.done [#allocation9], 256
    $region33: #{tpu_custom_call.1} parent=1 // pred_fallthru
      _
    %281 = vsyncpa [#allocation3], 1
    %282 = vsyncpa [#allocation6], 1
    %283 = vsyncpa [#allocation4], 1
    %284 = vsyncpa [#allocation9], 1

</llo_original>
